<compile_context>
chip_gen: v7x
topology: tpu7x:2x2x1
jax: 0.10.0
libtpu: 0.0.40
codegen_flags: <defaults>
</compile_context>

<pallas_src>
import jax
import jax.numpy as jnp
from jax.experimental import pallas as pl
from jax.experimental.pallas import tpu as pltpu

IMG_DIM = 28 * 28 * 1   # 784
HIDDEN = 128


def _round_up(n, m):
    return ((n + m - 1) // m) * m


def _disc_kernel(x_ref, w1_ref, b1_ref, w2_ref, b2_ref, o_ref):
    # ---- Linear(img_dim -> 128) ----  (bf16 MXU, f32 accumulate)
    x = x_ref[...].astype(jnp.bfloat16)           # no-op: x arrives bf16
    h = jnp.dot(x, w1_ref[...], preferred_element_type=jnp.float32)
    h = h + b1_ref[...]                           # b1 is [1, 128], broadcasts over batch
    # ---- LeakyReLU(0.1) ----          (VPU: mul + max)
    h = jnp.maximum(h, 0.1 * h)
    # ---- Linear(128 -> 1) ----        (VPU mul + XLU lane reduce; w2 is a [1,128] row)
    z = jnp.sum(h * w2_ref[...], axis=-1, keepdims=True) + b2_ref[0, 0]
    # ---- Sigmoid (numerically stable) ----
    #   sigmoid(z) = 1/(1+e^-z) if z>=0 else e^z/(1+e^z), using e = exp(-|z|) in (0,1].
    e = jnp.exp(-jnp.abs(z))
    inv = pl.reciprocal(1.0 + e, approx=False)    # exact; output may feed BCE loss
    o_ref[...] = jnp.where(z >= 0, inv, e * inv).astype(o_ref.dtype)


def _vmem_limit_bytes(tb):
    """Conservative scoped-VMEM budget for the chosen batch tile."""
    lane_pad = lambda n: _round_up(n, 128)
    x_bytes = 2 * tb * lane_pad(IMG_DIM) * 2          # double-buffered bf16 x tiles
    w1_bytes = IMG_DIM * lane_pad(HIDDEN) * 2         # resident bf16 W1
    out_bytes = 2 * tb * lane_pad(1) * 4              # double-buffered (TB,1) f32 out
    misc = 1 << 20                                    # b1/w2/compiler scratch
    est = x_bytes + w1_bytes + out_bytes + misc
    # 1.5x headroom, clamped to stay inside v7x's 64 MiB physical VMEM.
    return int(min(max(est * 3 // 2, 16 << 20), 48 << 20))


def discriminator_forward(x, w1, b1, w2, b2, *, block_b=1024):
    """x: [B, IMG_DIM] (bf16 preferred, f32 accepted) -> [B, 1] f32.

    w1: [IMG_DIM, HIDDEN], b1: [HIDDEN], w2: [HIDDEN, 1], b2: [1].
    """
    B = x.shape[0]

    # Batch tile: multiple of 8 (sublane rule). When the batch is big enough,
    # ensure the grid has >= 2 steps so v7x's two TensorCores both get work.
    if B <= 8:
        TB = B
    else:
        TB = min(block_b, _round_up(pl.cdiv(B, 2), 8))
        TB = min(TB, _round_up(B, 8))
    grid = (pl.cdiv(B, TB),)

    # One-time host-side layout/dtype fixes (not per-step work):
    w1_bf16 = w1.astype(jnp.bfloat16)                     # resident bf16 weight
    b1_2d = b1.reshape(1, HIDDEN).astype(jnp.float32)
    w2_row = w2.reshape(1, HIDDEN).astype(jnp.float32)    # [128,1] -> [1,128] row
    b2_2d = b2.reshape(1, 1).astype(jnp.float32)

    return pl.pallas_call(
        _disc_kernel,
        out_shape=jax.ShapeDtypeStruct((B, 1), jnp.float32),
        grid=grid,
        in_specs=[
            # x: one batch tile per grid step (double-buffered by the pipeline).
            pl.BlockSpec((TB, IMG_DIM), lambda i: (i, 0)),
            # Weights/biases: same block every step -> stay VMEM-resident.
            pl.BlockSpec((IMG_DIM, HIDDEN), lambda i: (0, 0)),
            pl.BlockSpec((1, HIDDEN), lambda i: (0, 0)),
            pl.BlockSpec((1, HIDDEN), lambda i: (0, 0)),
            # b2: scalar in SMEM (avoids a padded (8,128) VMEM tile + DMA).
            pl.BlockSpec(memory_space=pltpu.MemorySpace.SMEM),
        ],
        out_specs=pl.BlockSpec((TB, 1), lambda i: (i, 0)),
        compiler_params=pltpu.CompilerParams(
            dimension_semantics=("parallel",),        # megacore sharding on v7x
            vmem_limit_bytes=_vmem_limit_bytes(TB),   # v5e's 16 MiB default is too small
        ),
    )(x, w1_bf16, b1_2d, w2_row, b2_2d)


def init_params(key):
    """Deterministic init mimicking torch.nn.Linear (uniform +/- 1/sqrt(fan_in))."""
    k1, k2, k3, k4 = jax.random.split(key, 4)
    lim1 = 1.0 / jnp.sqrt(jnp.float32(IMG_DIM))
    lim2 = 1.0 / jnp.sqrt(jnp.float32(HIDDEN))
    w1 = jax.random.uniform(k1, (IMG_DIM, HIDDEN), jnp.float32, -lim1, lim1)
    b1 = jax.random.uniform(k2, (HIDDEN,), jnp.float32, -lim1, lim1)
    w2 = jax.random.uniform(k3, (HIDDEN, 1), jnp.float32, -lim2, lim2)
    b2 = jax.random.uniform(k4, (1,), jnp.float32, -lim2, lim2)
    return w1, b1, w2, b2


def _reference(x, w1, b1, w2, b2):
    # Same bf16-input contract as the kernel (intentional precision trade);
    # matmul accumulation and everything downstream is f32.
    h = x.astype(jnp.float32) @ w1.astype(jnp.bfloat16).astype(jnp.float32) + b1
    h = jnp.where(h > 0, h, 0.1 * h)
    z = h @ w2 + b2
    return jax.nn.sigmoid(z)


if __name__ == "__main__":
    key = jax.random.PRNGKey(0)
    kx, kp = jax.random.split(key)

    B = 8
    # x lives in HBM as bf16 (upstream producers should emit bf16 directly).
    x = jax.random.normal(kx, (B, IMG_DIM), jnp.float32).astype(jnp.bfloat16)
    w1, b1, w2, b2 = init_params(kp)

    out = discriminator_forward(x, w1, b1, w2, b2)
    out = jax.block_until_ready(out)

    ref = _reference(x, w1, b1, w2, b2)
    assert out.shape == (B, 1), out.shape
    # bf16 matmul inputs (intentional) -> slightly loosened tolerance vs f32 ref.
    assert jnp.allclose(out, ref, atol=1e-2, rtol=1e-2), (
        f"max abs err = {jnp.max(jnp.abs(out - ref))}")

    print("KERNEL_OK")
</pallas_src>

<mosaic_0001>
module attributes {stable_mosaic.version = 11 : i64} {
  func.func @_disc_kernel(%arg0: i32, %arg1: memref<8x784xbf16, #tpu.memory_space<vmem>>, %arg2: memref<784x128xbf16, #tpu.memory_space<vmem>>, %arg3: memref<1x128xf32, #tpu.memory_space<vmem>>, %arg4: memref<1x128xf32, #tpu.memory_space<vmem>>, %arg5: memref<1x1xf32, #tpu.memory_space<smem>>, %arg6: memref<8x1xf32, #tpu.memory_space<vmem>>) attributes {dimension_semantics = [#tpu.dimension_semantics<parallel>], iteration_bounds = array<i64: 1>, scalar_prefetch = 0 : i64, scratch_operands = 0 : i64, tpu.core_type = #tpu.core_type<tc>, window_params = [{transform_indices = @transform_0, window_bounds = array<i64: 8, 784>}, {pipeline_mode = #tpu.pipeline_mode<synchronous>, transform_indices = @transform_1, window_bounds = array<i64: 784, 128>}, {pipeline_mode = #tpu.pipeline_mode<synchronous>, transform_indices = @transform_2, window_bounds = array<i64: 1, 128>}, {pipeline_mode = #tpu.pipeline_mode<synchronous>, transform_indices = @transform_3, window_bounds = array<i64: 1, 128>}, {transform_indices = @transform_4, window_bounds = array<i64: 1, 1>}, {transform_indices = @transform_5, window_bounds = array<i64: 8, 1>}]} {
    %c0 = arith.constant 0 : index
    %c0_0 = arith.constant 0 : index
    %0 = vector.load %arg1[%c0, %c0_0] : memref<8x784xbf16, #tpu.memory_space<vmem>>, vector<8x784xbf16>
    %c0_1 = arith.constant 0 : index
    %c0_2 = arith.constant 0 : index
    %1 = vector.load %arg2[%c0_1, %c0_2] : memref<784x128xbf16, #tpu.memory_space<vmem>>, vector<784x128xbf16>
    %cst = arith.constant dense<0.000000e+00> : vector<8x128xf32>
    %2 = tpu.matmul %0, %1, %cst {dimension_numbers = #tpu.dot_dimension_numbers<[1], [0], [0], [1], [0, 0, 1, 1], [], []>} : vector<8x784xbf16>, vector<784x128xbf16>, vector<8x128xf32> -> vector<8x128xf32>
    %c0_3 = arith.constant 0 : index
    %c0_4 = arith.constant 0 : index
    %3 = vector.load %arg3[%c0_3, %c0_4] : memref<1x128xf32, #tpu.memory_space<vmem>>, vector<1x128xf32>
    %4 = vector.broadcast %3 : vector<1x128xf32> to vector<8x128xf32>
    %5 = arith.addf %2, %4 : vector<8x128xf32>
    %cst_5 = arith.constant 1.000000e-01 : f32
    %6 = vector.broadcast %cst_5 : f32 to vector<8x128xf32>
    %7 = arith.mulf %6, %5 : vector<8x128xf32>
    %8 = arith.maximumf %5, %7 : vector<8x128xf32>
    %c0_6 = arith.constant 0 : index
    %c0_7 = arith.constant 0 : index
    %9 = vector.load %arg4[%c0_6, %c0_7] : memref<1x128xf32, #tpu.memory_space<vmem>>, vector<1x128xf32>
    %10 = vector.broadcast %9 : vector<1x128xf32> to vector<8x128xf32>
    %11 = arith.mulf %8, %10 : vector<8x128xf32>
    %cst_8 = arith.constant dense<0.000000e+00> : vector<8xf32>
    %12 = vector.multi_reduction <add>, %11, %cst_8 [1] : vector<8x128xf32> to vector<8xf32>
    %13 = vector.shape_cast %12 : vector<8xf32> to vector<8x1xf32>
    %c0_9 = arith.constant 0 : index
    %c0_10 = arith.constant 0 : index
    %14 = memref.load %arg5[%c0_9, %c0_10] : memref<1x1xf32, #tpu.memory_space<smem>>
    %15 = vector.broadcast %14 : f32 to vector<8x1xf32>
    %16 = arith.addf %13, %15 : vector<8x1xf32>
    %17 = math.absf %16 : vector<8x1xf32>
    %cst_11 = arith.constant 0.000000e+00 : f32
    %18 = vector.broadcast %cst_11 : f32 to vector<8x1xf32>
    %19 = arith.subf %18, %17 : vector<8x1xf32>
    %20 = math.exp %19 : vector<8x1xf32>
    %cst_12 = arith.constant 1.000000e+00 : f32
    %21 = vector.broadcast %cst_12 : f32 to vector<8x1xf32>
    %22 = arith.addf %21, %20 : vector<8x1xf32>
    %23 = tpu.reciprocal %22 : vector<8x1xf32> -> vector<8x1xf32>
    %cst_13 = arith.constant 0.000000e+00 : f32
    %24 = vector.broadcast %cst_13 : f32 to vector<8x1xf32>
    %25 = arith.cmpf oge, %16, %24 : vector<8x1xf32>
    %26 = arith.mulf %20, %23 : vector<8x1xf32>
    %27 = arith.select %25, %23, %26 : vector<8x1xi1>, vector<8x1xf32>
    %c0_14 = arith.constant 0 : index
    %c0_15 = arith.constant 0 : index
    %28 = vector.load %arg6[%c0_14, %c0_15] : memref<8x1xf32, #tpu.memory_space<vmem>>, vector<8x1xf32>
    tpu.vector_store %arg6[%c0_14, %c0_15], %27 {strides = array<i32>} : memref<8x1xf32, #tpu.memory_space<vmem>>, vector<8x1xf32>,
    return
  }
  func.func @transform_0(%arg0: i32) -> (i32, i32) {
    %c0_i32 = arith.constant 0 : i32
    %c0_i32_0 = arith.constant 0 : i32
    return %arg0, %c0_i32 : i32, i32
  }
  func.func @transform_1(%arg0: i32) -> (i32, i32) {
    %c0_i32 = arith.constant 0 : i32
    %c0_i32_0 = arith.constant 0 : i32
    %c0_i32_1 = arith.constant 0 : i32
    return %c0_i32, %c0_i32_0 : i32, i32
  }
  func.func @transform_2(%arg0: i32) -> (i32, i32) {
    %c0_i32 = arith.constant 0 : i32
    %c0_i32_0 = arith.constant 0 : i32
    %c0_i32_1 = arith.constant 0 : i32
    return %c0_i32, %c0_i32_0 : i32, i32
  }
  func.func @transform_3(%arg0: i32) -> (i32, i32) {
    %c0_i32 = arith.constant 0 : i32
    %c0_i32_0 = arith.constant 0 : i32
    %c0_i32_1 = arith.constant 0 : i32
    return %c0_i32, %c0_i32_0 : i32, i32
  }
  func.func @transform_4(%arg0: i32) -> (i32, i32) {
    %c0_i32 = arith.constant 0 : i32
    %c0_i32_0 = arith.constant 0 : i32
    %c0_i32_1 = arith.constant 0 : i32
    return %c0_i32, %c0_i32_0 : i32, i32
  }
  func.func @transform_5(%arg0: i32) -> (i32, i32) {
    %c0_i32 = arith.constant 0 : i32
    %c0_i32_0 = arith.constant 0 : i32
    return %arg0, %c0_i32 : i32, i32
  }
}

</mosaic_0001>

<llo_original>
// kernel: tpu_custom_call.1
$region0: #{tpu_custom_call.1}
  #allocation0 [shape = 'u32[]', space=smem, size = 0x4, offset = 0x4, fixed_abs, tag = 'smem constant byte address 0x4 - core index']
  #allocation1 [shape = 'u32[144,128]{1,0:T(1,128)}', space=vmem, size = 0x12000, scoped, tag = 'internal scratch']
  #allocation2 [shape = 'f32[1,1]{1,0:T(1,128)S(6)}', space=smem, size = 0x200, scoped, tag = 'scoped memory for tpu_custom_call.1']
  %s0 = inlined_call_operand.hbm [shape: bf16[8,784], index: 0, kind: input, shape index: {}]
  %s1 = inlined_call_operand.hbm [shape: bf16[784,128], index: 1, kind: input, shape index: {}]
  %s2 = inlined_call_operand.vmem [shape: f32[1,128], index: 2, kind: input, shape index: {}]
  %s3 = inlined_call_operand.vmem [shape: f32[1,128], index: 3, kind: input, shape index: {}]
  %s4 = inlined_call_operand.<no memory space> [shape: f32[1,1], index: 4, kind: input, shape index: {}]
  %s5 = inlined_call_operand.vmem [shape: f32[8,1], index: 5, kind: output, shape index: {}]
  %s6 = sld [smem:[#allocation0]]
  $region38: #{tpu_custom_call.1} parent=0
    _
  %s8 = ssub.s32 1, %s6
  %s9 = scalar_select 0, %s8, %s6
  %10 = sst [smem:[#allocation2]] %s4
  $region1: #{tpu_custom_call.1} parent=0
    #allocation3 [shape = 'u8[14336]{0}', space=vmem, size = 0x3800, scoped, tag = 'input window, operand 0, single buffered']
    #allocation4 [shape = 's32[1]{0}', space=sflag, size = 0x4, scoped, tag = 'scoped memory for tpu_custom_call.1']
    #allocation5 [shape = 'u8[200704]{0}', space=vmem, size = 0x31000, scoped, tag = 'input window, operand 1, single buffered']
    #allocation6 [shape = 's32[1]{0}', space=sflag, size = 0x4, scoped, tag = 'scoped memory for tpu_custom_call.1']
    %11 = vsyncpa [#allocation4], 0
    %12 = vsyncpa [#allocation6], 0
    // Predicated region
    $region2: #{tpu_custom_call.1} parent=1 // pred_check
      _
    $region3: #{tpu_custom_call.1} parent=1 // pred_check_branch
      %14 = sbr.rel (0) target = $region5
    $region4: #{tpu_custom_call.1} parent=1 // pred_region
      %s16 = ssub.s32 448, 448
      %17 = vsyncadd [#allocation4], %s16
      %s19 = sshll.u32 [#allocation3], 4
      %s20 = int_to_ptr.vmem [resolvable:$true] %s19
      %22 = dma.hbm_to_vmem [thread:$0]  %s0, 448, %s20, [#allocation4]
    $region5: #{tpu_custom_call.1} parent=1 // pred_fallthru
      _
    // Predicated region
    $region6: #{tpu_custom_call.1} parent=1 // pred_check
      _
    $region7: #{tpu_custom_call.1} parent=1 // pred_check_branch
      %24 = sbr.rel (0) target = $region9
    $region8: #{tpu_custom_call.1} parent=1 // pred_region
      %s26 = ssub.s32 6272, 6272
      %27 = vsyncadd [#allocation6], %s26
      %s28 = sshll.u32 [#allocation5], 4
      %s29 = int_to_ptr.vmem [resolvable:$true] %s28
      %34 = dma.hbm_to_vmem [thread:$0]  %s1, 6272, %s29, [#allocation6], 64, 64, 4
    $region9: #{tpu_custom_call.1} parent=1 // pred_fallthru
      _
    // Predicated region
    $region10: #{tpu_custom_call.1} parent=1 // pred_check
      _
    $region11: #{tpu_custom_call.1} parent=1 // pred_check_branch
      %36 = sbr.rel (0) target = $region13
    $region12: #{tpu_custom_call.1} parent=1 // pred_region
      _
    $region13: #{tpu_custom_call.1} parent=1 // pred_fallthru
      _
    // Predicated region
    $region14: #{tpu_custom_call.1} parent=1 // pred_check
      _
    $region15: #{tpu_custom_call.1} parent=1 // pred_check_branch
      %38 = sbr.rel (0) target = $region17
    $region16: #{tpu_custom_call.1} parent=1 // pred_region
      _
    $region17: #{tpu_custom_call.1} parent=1 // pred_fallthru
      _
    // Predicated region
    $region18: #{tpu_custom_call.1} parent=1 // pred_check
      _
    $region19: #{tpu_custom_call.1} parent=1 // pred_check_branch
      %40 = sbr.rel (0) target = $region21
    $region20: #{tpu_custom_call.1} parent=1 // pred_region
      _
    $region21: #{tpu_custom_call.1} parent=1 // pred_fallthru
      _
    // Predicated region
    $region22: #{tpu_custom_call.1} parent=1 // pred_check
      _
    $region23: #{tpu_custom_call.1} parent=1 // pred_check_branch
      %42 = sbr.rel (0) target = $region25
    $region24: #{tpu_custom_call.1} parent=1 // pred_region
      %43 = dma.done [#allocation4], 448
    $region25: #{tpu_custom_call.1} parent=1 // pred_fallthru
      _
    // Predicated region
    $region26: #{tpu_custom_call.1} parent=1 // pred_check
      _
    $region27: #{tpu_custom_call.1} parent=1 // pred_check_branch
      %45 = sbr.rel (0) target = $region29
    $region28: #{tpu_custom_call.1} parent=1 // pred_region
      %46 = dma.done [#allocation6], 6272
    $region29: #{tpu_custom_call.1} parent=1 // pred_fallthru
      _
    %v48 = vld [vmem:[#allocation3] sm:$0xff]
    %v49 = vld [vmem:[#allocation3 + $0x8] sm:$0xff]
    %v50 = vld [vmem:[#allocation3 + $0x10] sm:$0xff]
    %v51 = vld [vmem:[#allocation3 + $0x18] sm:$0xf]
    %v52 = vld [vmem:[#allocation5] sm:$0xf]
    %v53 = vld [vmem:[#allocation5 + $0x4] sm:$0xf]
    %v54 = vld [vmem:[#allocation5 + $0x8] sm:$0xf]
    %v55 = vld [vmem:[#allocation5 + $0xc] sm:$0xf]
    %v56 = vld [vmem:[#allocation5 + $0x10] sm:$0xf]
    %v57 = vld [vmem:[#allocation5 + $0x14] sm:$0xf]
    %v58 = vld [vmem:[#allocation5 + $0x18] sm:$0xf]
    %v59 = vld [vmem:[#allocation5 + $0x1c] sm:$0xf]
    %v60 = vld [vmem:[#allocation5 + $0x20] sm:$0xf]
    %v61 = vld [vmem:[#allocation5 + $0x24] sm:$0xf]
    %v62 = vld [vmem:[#allocation5 + $0x28] sm:$0xf]
    %v63 = vld [vmem:[#allocation5 + $0x2c] sm:$0xf]
    %v64 = vld [vmem:[#allocation5 + $0x30] sm:$0xf]
    %v65 = vld [vmem:[#allocation5 + $0x34] sm:$0xf]
    %v66 = vld [vmem:[#allocation5 + $0x38] sm:$0xf]
    %v67 = vld [vmem:[#allocation5 + $0x3c] sm:$0xf]
    %v68 = vld [vmem:[#allocation5 + $0x40] sm:$0xf]
    %v69 = vld [vmem:[#allocation5 + $0x44] sm:$0xf]
    %v70 = vld [vmem:[#allocation5 + $0x48] sm:$0xf]
    %v71 = vld [vmem:[#allocation5 + $0x4c] sm:$0xf]
    %v72 = vld [vmem:[#allocation5 + $0x50] sm:$0xf]
    %v73 = vld [vmem:[#allocation5 + $0x54] sm:$0xf]
    %v74 = vld [vmem:[#allocation5 + $0x58] sm:$0xf]
    %v75 = vld [vmem:[#allocation5 + $0x5c] sm:$0xf]
    %v76 = vld [vmem:[#allocation5 + $0x60] sm:$0xf]
    %v77 = vld [vmem:[#allocation5 + $0x64] sm:$0xf]
    %v78 = vld [vmem:[#allocation5 + $0x68] sm:$0xf]
    %v79 = vld [vmem:[#allocation5 + $0x6c] sm:$0xf]
    %v80 = vld [vmem:[#allocation5 + $0x70] sm:$0xf]
    %v81 = vld [vmem:[#allocation5 + $0x74] sm:$0xf]
    %v82 = vld [vmem:[#allocation5 + $0x78] sm:$0xf]
    %v83 = vld [vmem:[#allocation5 + $0x7c] sm:$0xf]
    %v84 = vld [vmem:[#allocation5 + $0x80] sm:$0xf]
    %v85 = vld [vmem:[#allocation5 + $0x84] sm:$0xf]
    %v86 = vld [vmem:[#allocation5 + $0x88] sm:$0xf]
    %v87 = vld [vmem:[#allocation5 + $0x8c] sm:$0xf]
    %v88 = vld [vmem:[#allocation5 + $0x90] sm:$0xf]
    %v89 = vld [vmem:[#allocation5 + $0x94] sm:$0xf]
    %v90 = vld [vmem:[#allocation5 + $0x98] sm:$0xf]
    %v91 = vld [vmem:[#allocation5 + $0x9c] sm:$0xf]
    %v92 = vld [vmem:[#allocation5 + $0xa0] sm:$0xf]
    %v93 = vld [vmem:[#allocation5 + $0xa4] sm:$0xf]
    %v94 = vld [vmem:[#allocation5 + $0xa8] sm:$0xf]
    %v95 = vld [vmem:[#allocation5 + $0xac] sm:$0xf]
    %v96 = vld [vmem:[#allocation5 + $0xb0] sm:$0xf]
    %v97 = vld [vmem:[#allocation5 + $0xb4] sm:$0xf]
    %v98 = vld [vmem:[#allocation5 + $0xb8] sm:$0xf]
    %v99 = vld [vmem:[#allocation5 + $0xbc] sm:$0xf]
    %v100 = vld [vmem:[#allocation5 + $0xc0] sm:$0xf]
    %v101 = vld [vmem:[#allocation5 + $0xc4] sm:$0xf]
    %v102 = vld [vmem:[#allocation5 + $0xc8] sm:$0xf]
    %v103 = vld [vmem:[#allocation5 + $0xcc] sm:$0xf]
    %v104 = vld [vmem:[#allocation5 + $0xd0] sm:$0xf]
    %v105 = vld [vmem:[#allocation5 + $0xd4] sm:$0xf]
    %v106 = vld [vmem:[#allocation5 + $0xd8] sm:$0xf]
    %v107 = vld [vmem:[#allocation5 + $0xdc] sm:$0xf]
    %v108 = vld [vmem:[#allocation5 + $0xe0] sm:$0xf]
    %v109 = vld [vmem:[#allocation5 + $0xe4] sm:$0xf]
    %v110 = vld [vmem:[#allocation5 + $0xe8] sm:$0xf]
    %v111 = vld [vmem:[#allocation5 + $0xec] sm:$0xf]
    %v112 = vld [vmem:[#allocation5 + $0xf0] sm:$0xf]
    %v113 = vld [vmem:[#allocation5 + $0xf4] sm:$0xf]
    %v114 = vld [vmem:[#allocation5 + $0xf8] sm:$0xf]
    %v115 = vld [vmem:[#allocation5 + $0xfc] sm:$0xf]
    %v116 = vld [vmem:[#allocation5 + $0x100] sm:$0xf]
    %v117 = vld [vmem:[#allocation5 + $0x104] sm:$0xf]
    %v118 = vld [vmem:[#allocation5 + $0x108] sm:$0xf]
    %v119 = vld [vmem:[#allocation5 + $0x10c] sm:$0xf]
    %v120 = vld [vmem:[#allocation5 + $0x110] sm:$0xf]
    %v121 = vld [vmem:[#allocation5 + $0x114] sm:$0xf]
    %v122 = vld [vmem:[#allocation5 + $0x118] sm:$0xf]
    %v123 = vld [vmem:[#allocation5 + $0x11c] sm:$0xf]
    %v124 = vld [vmem:[#allocation5 + $0x120] sm:$0xf]
    %v125 = vld [vmem:[#allocation5 + $0x124] sm:$0xf]
    %v126 = vld [vmem:[#allocation5 + $0x128] sm:$0xf]
    %v127 = vld [vmem:[#allocation5 + $0x12c] sm:$0xf]
    %v128 = vld [vmem:[#allocation5 + $0x130] sm:$0xf]
    %v129 = vld [vmem:[#allocation5 + $0x134] sm:$0xf]
    %v130 = vld [vmem:[#allocation5 + $0x138] sm:$0xf]
    %v131 = vld [vmem:[#allocation5 + $0x13c] sm:$0xf]
    %v132 = vld [vmem:[#allocation5 + $0x140] sm:$0xf]
    %v133 = vld [vmem:[#allocation5 + $0x144] sm:$0xf]
    %v134 = vld [vmem:[#allocation5 + $0x148] sm:$0xf]
    %v135 = vld [vmem:[#allocation5 + $0x14c] sm:$0xf]
    %v136 = vld [vmem:[#allocation5 + $0x150] sm:$0xf]
    %v137 = vld [vmem:[#allocation5 + $0x154] sm:$0xf]
    %v138 = vld [vmem:[#allocation5 + $0x158] sm:$0xf]
    %v139 = vld [vmem:[#allocation5 + $0x15c] sm:$0xf]
    %v140 = vld [vmem:[#allocation5 + $0x160] sm:$0xf]
    %v141 = vld [vmem:[#allocation5 + $0x164] sm:$0xf]
    %v142 = vld [vmem:[#allocation5 + $0x168] sm:$0xf]
    %v143 = vld [vmem:[#allocation5 + $0x16c] sm:$0xf]
    %v144 = vld [vmem:[#allocation5 + $0x170] sm:$0xf]
    %v145 = vld [vmem:[#allocation5 + $0x174] sm:$0xf]
    %v146 = vld [vmem:[#allocation5 + $0x178] sm:$0xf]
    %v147 = vld [vmem:[#allocation5 + $0x17c] sm:$0xf]
    %v148 = vld [vmem:[#allocation5 + $0x180] sm:$0xf]
    %v149 = vld [vmem:[#allocation5 + $0x184] sm:$0xf]
    %v150 = vld [vmem:[%s2] sm:$0x1]
    %v152 = vlaneseq
    %v153 = vshrl.u32 %v152, 7
    %v154 = vsub.s32 0, %v153
    %v155 = vrot.slane %v150, %v154
    %v161 = vunpack.c.l.b16 %v48
    %v162 = vunpack.c.h.b16 %v48
    %v163 = vunpack.c.l.b16 %v49
    %v164 = vunpack.c.h.b16 %v49
    %v165 = vunpack.c.l.b16 %v50
    %v166 = vunpack.c.h.b16 %v50
    %v167 = vunpack.c.l.b16 %v51
    %v168 = vpack.c.b16 %v161, %v161
    %v169 = vpack.c.b16 %v162, %v162
    %v170 = vpack.c.b16 %v163, %v163
    %v171 = vpack.c.b16 %v164, %v164
    %v172 = vpack.c.b16 %v165, %v165
    %v173 = vpack.c.b16 %v166, %v166
    %v174 = vpack.c.b16 %v167, %v167
    %v279 = vunpack.c.l.b16 %v52
    %v280 = vunpack.c.l.b16 %v53
    %v281 = vunpack.c.l.b16 %v54
    %v282 = vunpack.c.l.b16 %v55
    %v283 = vunpack.c.l.b16 %v56
    %v284 = vunpack.c.l.b16 %v57
    %v285 = vunpack.c.l.b16 %v58
    %v286 = vunpack.c.l.b16 %v59
    %v287 = vunpack.c.l.b16 %v60
    %v288 = vunpack.c.l.b16 %v61
    %v289 = vunpack.c.l.b16 %v62
    %v290 = vunpack.c.l.b16 %v63
    %v291 = vunpack.c.l.b16 %v64
    %v292 = vunpack.c.l.b16 %v65
    %v293 = vunpack.c.l.b16 %v66
    %v294 = vunpack.c.l.b16 %v67
    %v295 = vunpack.c.l.b16 %v68
    %v296 = vunpack.c.l.b16 %v69
    %v297 = vunpack.c.l.b16 %v70
    %v298 = vunpack.c.l.b16 %v71
    %v299 = vunpack.c.l.b16 %v72
    %v300 = vunpack.c.l.b16 %v73
    %v301 = vunpack.c.l.b16 %v74
    %v302 = vunpack.c.l.b16 %v75
    %v303 = vunpack.c.l.b16 %v76
    %v304 = vunpack.c.l.b16 %v77
    %v305 = vunpack.c.l.b16 %v78
    %v306 = vunpack.c.l.b16 %v79
    %v307 = vunpack.c.l.b16 %v80
    %v308 = vunpack.c.l.b16 %v81
    %v309 = vunpack.c.l.b16 %v82
    %v310 = vunpack.c.l.b16 %v83
    %v311 = vunpack.c.l.b16 %v84
    %v312 = vunpack.c.l.b16 %v85
    %v313 = vunpack.c.l.b16 %v86
    %v314 = vunpack.c.l.b16 %v87
    %v315 = vunpack.c.l.b16 %v88
    %v316 = vunpack.c.l.b16 %v89
    %v317 = vunpack.c.l.b16 %v90
    %v318 = vunpack.c.l.b16 %v91
    %v319 = vunpack.c.l.b16 %v92
    %v320 = vunpack.c.l.b16 %v93
    %v321 = vunpack.c.l.b16 %v94
    %v322 = vunpack.c.l.b16 %v95
    %v323 = vunpack.c.l.b16 %v96
    %v324 = vunpack.c.l.b16 %v97
    %v325 = vunpack.c.l.b16 %v98
    %v326 = vunpack.c.l.b16 %v99
    %v327 = vunpack.c.l.b16 %v100
    %v328 = vunpack.c.l.b16 %v101
    %v329 = vunpack.c.l.b16 %v102
    %v330 = vunpack.c.l.b16 %v103
    %v331 = vunpack.c.l.b16 %v104
    %v332 = vunpack.c.l.b16 %v105
    %v333 = vunpack.c.l.b16 %v106
    %v334 = vunpack.c.l.b16 %v107
    %v335 = vunpack.c.l.b16 %v108
    %v336 = vunpack.c.l.b16 %v109
    %v337 = vunpack.c.l.b16 %v110
    %v338 = vunpack.c.l.b16 %v111
    %v339 = vunpack.c.l.b16 %v112
    %v340 = vunpack.c.l.b16 %v113
    %v341 = vunpack.c.l.b16 %v114
    %v342 = vunpack.c.l.b16 %v115
    %v343 = vunpack.c.l.b16 %v116
    %v344 = vunpack.c.l.b16 %v117
    %v345 = vunpack.c.l.b16 %v118
    %v346 = vunpack.c.l.b16 %v119
    %v347 = vunpack.c.l.b16 %v120
    %v348 = vunpack.c.l.b16 %v121
    %v349 = vunpack.c.l.b16 %v122
    %v350 = vunpack.c.l.b16 %v123
    %v351 = vunpack.c.l.b16 %v124
    %v352 = vunpack.c.l.b16 %v125
    %v353 = vunpack.c.l.b16 %v126
    %v354 = vunpack.c.l.b16 %v127
    %v355 = vunpack.c.l.b16 %v128
    %v356 = vunpack.c.l.b16 %v129
    %v357 = vunpack.c.l.b16 %v130
    %v358 = vunpack.c.l.b16 %v131
    %v359 = vunpack.c.l.b16 %v132
    %v360 = vunpack.c.l.b16 %v133
    %v361 = vunpack.c.l.b16 %v134
    %v362 = vunpack.c.l.b16 %v135
    %v363 = vunpack.c.l.b16 %v136
    %v364 = vunpack.c.l.b16 %v137
    %v365 = vunpack.c.l.b16 %v138
    %v366 = vunpack.c.l.b16 %v139
    %v367 = vunpack.c.l.b16 %v140
    %v368 = vunpack.c.l.b16 %v141
    %v369 = vunpack.c.l.b16 %v142
    %v370 = vunpack.c.l.b16 %v143
    %v371 = vunpack.c.l.b16 %v144
    %v372 = vunpack.c.l.b16 %v145
    %v373 = vunpack.c.l.b16 %v146
    %v374 = vunpack.c.l.b16 %v147
    %v375 = vunpack.c.l.b16 %v148
    %v376 = vunpack.c.l.b16 %v149
    %v377 = vpack.c.b16 %v280, %v279
    %v378 = vpack.c.b16 %v282, %v281
    %v379 = vpack.c.b16 %v284, %v283
    %v380 = vpack.c.b16 %v286, %v285
    %v381 = vpack.c.b16 %v288, %v287
    %v382 = vpack.c.b16 %v290, %v289
    %v383 = vpack.c.b16 %v292, %v291
    %v384 = vpack.c.b16 %v294, %v293
    %v385 = vpack.c.b16 %v296, %v295
    %v386 = vpack.c.b16 %v298, %v297
    %v387 = vpack.c.b16 %v300, %v299
    %v388 = vpack.c.b16 %v302, %v301
    %v389 = vpack.c.b16 %v304, %v303
    %v390 = vpack.c.b16 %v306, %v305
    %v391 = vpack.c.b16 %v308, %v307
    %v392 = vpack.c.b16 %v310, %v309
    %v393 = vpack.c.b16 %v312, %v311
    %v394 = vpack.c.b16 %v314, %v313
    %v395 = vpack.c.b16 %v316, %v315
    %v396 = vpack.c.b16 %v318, %v317
    %v397 = vpack.c.b16 %v320, %v319
    %v398 = vpack.c.b16 %v322, %v321
    %v399 = vpack.c.b16 %v324, %v323
    %v400 = vpack.c.b16 %v326, %v325
    %v401 = vpack.c.b16 %v328, %v327
    %v402 = vpack.c.b16 %v330, %v329
    %v403 = vpack.c.b16 %v332, %v331
    %v404 = vpack.c.b16 %v334, %v333
    %v405 = vpack.c.b16 %v336, %v335
    %v406 = vpack.c.b16 %v338, %v337
    %v407 = vpack.c.b16 %v340, %v339
    %v408 = vpack.c.b16 %v342, %v341
    %v409 = vpack.c.b16 %v344, %v343
    %v410 = vpack.c.b16 %v346, %v345
    %v411 = vpack.c.b16 %v348, %v347
    %v412 = vpack.c.b16 %v350, %v349
    %v413 = vpack.c.b16 %v352, %v351
    %v414 = vpack.c.b16 %v354, %v353
    %v415 = vpack.c.b16 %v356, %v355
    %v416 = vpack.c.b16 %v358, %v357
    %v417 = vpack.c.b16 %v360, %v359
    %v418 = vpack.c.b16 %v362, %v361
    %v419 = vpack.c.b16 %v364, %v363
    %v420 = vpack.c.b16 %v366, %v365
    %v421 = vpack.c.b16 %v368, %v367
    %v422 = vpack.c.b16 %v370, %v369
    %v423 = vpack.c.b16 %v372, %v371
    %v424 = vpack.c.b16 %v374, %v373
    %v425 = vpack.c.b16 %v376, %v375
    %vm475 = vcmask 130048
    %v477 = vsel %vm475, %v174, 0
    %479 = vmatprep.subr.bf16.mxu0 0
    %480 = vmatpush1.bf16.msra.mxu0 %v377
    %481 = vmatprep.subr.bf16.mxu0 0
    %482 = vmatpush1.bf16.msra.mxu0 %v378
    %483 = vmatprep.subr.bf16.mxu0 0
    %484 = vmatpush1.bf16.msra.mxu0 %v379
    %485 = vmatprep.subr.bf16.mxu0 0
    %486 = vmatpush1.bf16.msra.mxu0 %v380
    %487 = vmatprep.subr.bf16.mxu0 0
    %488 = vmatpush1.bf16.msra.mxu0 %v381
    %489 = vmatprep.subr.bf16.mxu0 0
    %490 = vmatpush1.bf16.msra.mxu0 %v382
    %491 = vmatprep.subr.bf16.mxu0 0
    %492 = vmatpush1.bf16.msra.mxu0 %v383
    %493 = vmatprep.subr.bf16.mxu0 0
    %494 = vmatpush1.bf16.msra.mxu0 %v384
    %495 = vmatprep.subr.bf16.mxu0 0
    %496 = vmatpush1.bf16.msra.mxu0 %v385
    %497 = vmatprep.subr.bf16.mxu0 0
    %498 = vmatpush1.bf16.msra.mxu0 %v386
    %499 = vmatprep.subr.bf16.mxu0 0
    %500 = vmatpush1.bf16.msra.mxu0 %v387
    %501 = vmatprep.subr.bf16.mxu0 0
    %502 = vmatpush1.bf16.msra.mxu0 %v388
    %503 = vmatprep.subr.bf16.mxu0 0
    %504 = vmatpush1.bf16.msra.mxu0 %v389
    %505 = vmatprep.subr.bf16.mxu0 0
    %506 = vmatpush1.bf16.msra.mxu0 %v390
    %507 = vmatprep.subr.bf16.mxu0 0
    %508 = vmatpush1.bf16.msra.mxu0 %v391
    %509 = vmatprep.subr.bf16.mxu0 0
    %510 = vmatpush1.bf16.msra.mxu0 %v392
    %511 = vmatprep.mubr.bf16.mxu0 %v169
    %512 = vmatmul.mubr.bf16.gmra.mrb[0].mxu0 %v168
    %v513 = vpop.f32.mrb[0].mxu0
    %v514 = vadd.f32 %v155, %v513
    %v515 = vpop.f32.mrb[0].mxu0
    %v516 = vpop.f32.mrb[0].mxu0
    %v517 = vpop.f32.mrb[0].mxu0
    %518 = vdwg.mxu0
    %519 = vmatprep.subr.bf16.mxu0 0
    %520 = vmatpush1.bf16.msra.mxu0 %v393
    %521 = vmatprep.subr.bf16.mxu0 0
    %522 = vmatpush1.bf16.msra.mxu0 %v394
    %523 = vmatprep.subr.bf16.mxu0 0
    %524 = vmatpush1.bf16.msra.mxu0 %v395
    %525 = vmatprep.subr.bf16.mxu0 0
    %526 = vmatpush1.bf16.msra.mxu0 %v396
    %527 = vmatprep.subr.bf16.mxu0 0
    %528 = vmatpush1.bf16.msra.mxu0 %v397
    %529 = vmatprep.subr.bf16.mxu0 0
    %530 = vmatpush1.bf16.msra.mxu0 %v398
    %531 = vmatprep.subr.bf16.mxu0 0
    %532 = vmatpush1.bf16.msra.mxu0 %v399
    %533 = vmatprep.subr.bf16.mxu0 0
    %534 = vmatpush1.bf16.msra.mxu0 %v400
    %535 = vmatprep.subr.bf16.mxu0 0
    %536 = vmatpush1.bf16.msra.mxu0 %v401
    %537 = vmatprep.subr.bf16.mxu0 0
    %538 = vmatpush1.bf16.msra.mxu0 %v402
    %539 = vmatprep.subr.bf16.mxu0 0
    %540 = vmatpush1.bf16.msra.mxu0 %v403
    %541 = vmatprep.subr.bf16.mxu0 0
    %542 = vmatpush1.bf16.msra.mxu0 %v404
    %543 = vmatprep.subr.bf16.mxu0 0
    %544 = vmatpush1.bf16.msra.mxu0 %v405
    %545 = vmatprep.subr.bf16.mxu0 0
    %546 = vmatpush1.bf16.msra.mxu0 %v406
    %547 = vmatprep.subr.bf16.mxu0 0
    %548 = vmatpush1.bf16.msra.mxu0 %v407
    %549 = vmatprep.subr.bf16.mxu0 0
    %550 = vmatpush1.bf16.msra.mxu0 %v408
    %551 = vmatprep.mubr.bf16.mxu0 %v171
    %552 = vmatmul.mubr.bf16.gmra.mrb[0].mxu0 %v170
    %v553 = vpop.f32.mrb[0].mxu0
    %v554 = vadd.f32 %v514, %v553
    %v555 = vpop.f32.mrb[0].mxu0
    %v556 = vpop.f32.mrb[0].mxu0
    %v557 = vpop.f32.mrb[0].mxu0
    %558 = vdwg.mxu0
    %559 = vmatprep.subr.bf16.mxu0 0
    %560 = vmatpush1.bf16.msra.mxu0 %v409
    %561 = vmatprep.subr.bf16.mxu0 0
    %562 = vmatpush1.bf16.msra.mxu0 %v410
    %563 = vmatprep.subr.bf16.mxu0 0
    %564 = vmatpush1.bf16.msra.mxu0 %v411
    %565 = vmatprep.subr.bf16.mxu0 0
    %566 = vmatpush1.bf16.msra.mxu0 %v412
    %567 = vmatprep.subr.bf16.mxu0 0
    %568 = vmatpush1.bf16.msra.mxu0 %v413
    %569 = vmatprep.subr.bf16.mxu0 0
    %570 = vmatpush1.bf16.msra.mxu0 %v414
    %571 = vmatprep.subr.bf16.mxu0 0
    %572 = vmatpush1.bf16.msra.mxu0 %v415
    %573 = vmatprep.subr.bf16.mxu0 0
    %574 = vmatpush1.bf16.msra.mxu0 %v416
    %575 = vmatprep.subr.bf16.mxu0 0
    %576 = vmatpush1.bf16.msra.mxu0 %v417
    %577 = vmatprep.subr.bf16.mxu0 0
    %578 = vmatpush1.bf16.msra.mxu0 %v418
    %579 = vmatprep.subr.bf16.mxu0 0
    %580 = vmatpush1.bf16.msra.mxu0 %v419
    %581 = vmatprep.subr.bf16.mxu0 0
    %582 = vmatpush1.bf16.msra.mxu0 %v420
    %583 = vmatprep.subr.bf16.mxu0 0
    %584 = vmatpush1.bf16.msra.mxu0 %v421
    %585 = vmatprep.subr.bf16.mxu0 0
    %586 = vmatpush1.bf16.msra.mxu0 %v422
    %587 = vmatprep.subr.bf16.mxu0 0
    %588 = vmatpush1.bf16.msra.mxu0 %v423
    %589 = vmatprep.subr.bf16.mxu0 0
    %590 = vmatpush1.bf16.msra.mxu0 %v424
    %591 = vmatprep.mubr.bf16.mxu0 %v173
    %592 = vmatmul.mubr.bf16.gmra.mrb[0].mxu0 %v172
    %v593 = vpop.f32.mrb[0].mxu0
    %v594 = vadd.f32 %v554, %v593
    %v595 = vpop.f32.mrb[0].mxu0
    %v596 = vpop.f32.mrb[0].mxu0
    %v597 = vpop.f32.mrb[0].mxu0
    %598 = vdwg.mxu0
    %599 = vmatprep.subr.bf16.mxu0 0
    %600 = vmatpush1.bf16.msra.mxu0 %v425
    %601 = vmatprep.subr.bf16.mxu0 0
    %602 = vmatpush1.bf16.msra.mxu0 0
    %603 = vmatprep.subr.bf16.mxu0 0
    %604 = vmatpush1.bf16.msra.mxu0 0
    %605 = vmatprep.subr.bf16.mxu0 0
    %606 = vmatpush1.bf16.msra.mxu0 0
    %607 = vmatprep.subr.bf16.mxu0 0
    %608 = vmatpush1.bf16.msra.mxu0 0
    %609 = vmatprep.subr.bf16.mxu0 0
    %610 = vmatpush1.bf16.msra.mxu0 0
    %611 = vmatprep.subr.bf16.mxu0 0
    %612 = vmatpush1.bf16.msra.mxu0 0
    %613 = vmatprep.subr.bf16.mxu0 0
    %614 = vmatpush1.bf16.msra.mxu0 0
    %615 = vmatprep.subr.bf16.mxu0 0
    %616 = vmatpush1.bf16.msra.mxu0 0
    %617 = vmatprep.subr.bf16.mxu0 0
    %618 = vmatpush1.bf16.msra.mxu0 0
    %619 = vmatprep.subr.bf16.mxu0 0
    %620 = vmatpush1.bf16.msra.mxu0 0
    %621 = vmatprep.subr.bf16.mxu0 0
    %622 = vmatpush1.bf16.msra.mxu0 0
    %623 = vmatprep.subr.bf16.mxu0 0
    %624 = vmatpush1.bf16.msra.mxu0 0
    %625 = vmatprep.subr.bf16.mxu0 0
    %626 = vmatpush1.bf16.msra.mxu0 0
    %627 = vmatprep.subr.bf16.mxu0 0
    %628 = vmatpush1.bf16.msra.mxu0 0
    %629 = vmatprep.subr.bf16.mxu0 0
    %630 = vmatpush1.bf16.msra.mxu0 0
    %631 = vmatprep.mubr.bf16.mxu0 0
    %632 = vmatmul.mubr.bf16.gmra.mrb[0].mxu0 %v477
    %v633 = vpop.f32.mrb[0].mxu0
    %v634 = vadd.f32 %v594, %v633
    %v635 = vpop.f32.mrb[0].mxu0
    %v636 = vpop.f32.mrb[0].mxu0
    %v637 = vpop.f32.mrb[0].mxu0
    %638 = vdwg.mxu0
    %v639 = vmul.f32 %v634, 0.1
    %v640 = vmax.f32 %v634, %v639
    %v641 = vld [vmem:[%s3] sm:$0x1]
    %v643 = vlaneseq
    %v644 = vshrl.u32 %v643, 7
    %v645 = vsub.s32 0, %v644
    %v646 = vrot.slane %v641, %v645
    %v648 = vmul.f32 %v640, %v646
    %649 = vadd.xlane.f32.xlu0 %v648
    %v650 = vpop.xlane.xlu0 %649
    %s651 = sld [smem:[#allocation2]]
    %v652 = vstv %s651
    %v653 = vadd.f32 %v650, %v652
    %v654 = vand.u32 2147483647, %v653
    %v655 = vsub.f32 0.0, %v654
    %v656 = vmul.f32 %v655, 1.442695
    %v657 = vpow.pop %v656
    %v658 = vadd.f32 %v657, 1.0
    %v659 = vrcp.pop %v658
    %vm660 = vcmp.ge.f32.partialorder %v653, 0.0
    %v661 = vmul.f32 %v657, %v659
    %v662 = vsel %vm660, %v659, %v661
    %vm663 = vcmask 7168
    %664 = vst.msk [vmem:[%s5] sm:$0xff] %vm663, %v662
    // Predicated region
    $region30: #{tpu_custom_call.1} parent=1 // pred_check
      _
    $region31: #{tpu_custom_call.1} parent=1 // pred_check_branch
      %666 = sbr.rel (0) target = $region33
    $region32: #{tpu_custom_call.1} parent=1 // pred_region
      _
    $region33: #{tpu_custom_call.1} parent=1 // pred_fallthru
      _
    // Predicated region
    $region34: #{tpu_custom_call.1} parent=1 // pred_check
      _
    $region35: #{tpu_custom_call.1} parent=1 // pred_check_branch
      %668 = sbr.rel (0) target = $region37
    $region36: #{tpu_custom_call.1} parent=1 // pred_region
      _
    $region37: #{tpu_custom_call.1} parent=1 // pred_fallthru
      _
    %669 = vsyncpa [#allocation4], 1
    %670 = vsyncpa [#allocation6], 1

</llo_original>
